<compile_context>
chip_gen: v5e
topology: v5e:2x2
jax: 0.10.0
libtpu: 0.0.40
codegen_flags: <defaults>
</compile_context>

<pallas_src>
import functools
import math

import jax
import jax.numpy as jnp
from jax.experimental import pallas as pl
from jax.experimental.pallas import tpu as pltpu


# ---------------------------------------------------------------------------
# helpers
# ---------------------------------------------------------------------------

def _round_up(x, m):
    return ((x + m - 1) // m) * m


def _min_tree(vals):
    """Balanced jnp.minimum reduction tree (shorter VPU dependency chain than a
    serial chain for larger kernel sizes)."""
    vals = list(vals)
    while len(vals) > 1:
        nxt = [jnp.minimum(vals[i], vals[i + 1])
               for i in range(0, len(vals) - 1, 2)]
        if len(vals) % 2:
            nxt.append(vals[-1])
        vals = nxt
    return vals[0]


def _pad_value(dtype):
    """Identity element for `min` in `dtype` (MaxPool1d's implicit -inf padding
    on -x is +inf / dtype-max padding for the min)."""
    dtype = jnp.dtype(dtype)
    if jnp.issubdtype(dtype, jnp.floating):
        if dtype in (jnp.dtype(jnp.float64), jnp.dtype(jnp.float32),
                     jnp.dtype(jnp.float16), jnp.dtype(jnp.bfloat16)):
            return float("inf")
        return float(jnp.finfo(dtype).max)          # fp8-style dtypes: no inf
    if jnp.issubdtype(dtype, jnp.integer):
        return int(jnp.iinfo(dtype).max)
    raise TypeError(f"unsupported dtype for min pooling: {dtype}")


def _vmem_limit_bytes():
    """Generation-aware scoped-VMEM limit (v5e/v6e: 128 MiB physical -> 96 MiB
    requested; v7x: 64 MiB physical -> 48 MiB).  Conservative fallback if the
    hardware query is unavailable."""
    cap = 0
    try:
        cap = int(getattr(pltpu.get_tpu_info(), "vmem_capacity_bytes", 0))
    except Exception:
        cap = 0
    if cap <= 0:
        cap = 64 << 20                               # conservative: v7x physical
    return max(32 << 20, min((cap * 3) // 4, 96 << 20))


def _pick_batch_block(r, granularity, bytes_per_unit, budget,
                      min_steps=4, floor=512):
    """Block size along the flattened batch (N*C) axis.

    * largest multiple of `granularity` whose (double-buffered in + out +
      scratch) VMEM footprint fits `budget`,
    * capped so the 1-D grid has >= `min_steps` steps, as long as that keeps
      the block >= `floor` units (512-row/lane efficiency sweet spot),
    * no divisor-of-r requirement: the last block may be ragged and the grid is
      pl.cdiv(r, block).
    """
    if r <= granularity:
        return r                                     # single (full) block
    budget_block = max(
        granularity,
        (budget // max(bytes_per_unit, 1)) // granularity * granularity)
    desired = _round_up(pl.cdiv(r, min_steps), granularity)
    floor_b = min(_round_up(floor, granularity), budget_block)
    block = min(budget_block, max(desired, floor_b))
    return min(block, _round_up(r, granularity))


# ---------------------------------------------------------------------------
# kernels
# ---------------------------------------------------------------------------

def _minpool_rows_kernel(x_ref, o_ref, *scratch, kernel_size, dilation,
                         l_out, padding, l_in, pad_val):
    """stride == 1 path.  Natural layout: N*C rows on sublanes, pooled axis on
    lanes.  x_ref: (rb, l_in), o_ref: (rb, l_out)."""
    if padding > 0:
        xp_ref = scratch[0]                          # (rb, l_in + 2*padding)
        rb = xp_ref.shape[0]
        pad_blk = jnp.full((rb, padding), pad_val, xp_ref.dtype)
        xp_ref[:, pl.ds(0, padding)] = pad_blk
        xp_ref[:, pl.ds(padding + l_in, padding)] = pad_blk
        xp_ref[:, pl.ds(padding, l_in)] = x_ref[...]
        src = xp_ref
    else:
        src = x_ref
    taps = [src[:, pl.ds(t * dilation, l_out)] for t in range(kernel_size)]
    o_ref[...] = _min_tree(taps).astype(o_ref.dtype)


def _minpool_cols_kernel(x_ref, o_ref, *scratch, kernel_size, stride, dilation,
                         l_out, padding, l_in, pad_val):
    """stride > 1 path.  (L, R) layout: pooled axis on sublanes (native
    sublane-strided tap reads), N*C on lanes (lane-dense stores).
    x_ref: (l_in, cb), o_ref: (l_out, cb)."""
    if padding > 0:
        xp_ref = scratch[0]                          # (l_in + 2*padding, cb)
        cb = xp_ref.shape[1]
        pad_blk = jnp.full((padding, cb), pad_val, xp_ref.dtype)
        xp_ref[pl.ds(0, padding), :] = pad_blk
        xp_ref[pl.ds(padding + l_in, padding), :] = pad_blk
        xp_ref[pl.ds(padding, l_in), :] = x_ref[...]
        src = xp_ref
    else:
        src = x_ref

    # TODO(synk): for packed dtypes / large K, replace the K strided reads with
    # contiguous taps + one strided subsample of the accumulator.
    def tap(t):
        start = t * dilation
        if stride == 1:
            return src[pl.ds(start, l_out), :]
        return src[pl.ds(start, l_out, stride=stride), :]

    taps = [tap(t) for t in range(kernel_size)]
    o_ref[...] = _min_tree(taps).astype(o_ref.dtype)


# ---------------------------------------------------------------------------
# wrapper
# ---------------------------------------------------------------------------

def min_pool1d_pallas(x, kernel_size, stride=None, padding=0, dilation=1,
                      ceil_mode=False):
    """MinPool1d.forward(x) == -MaxPool1d(kernel_size, stride, padding,
    dilation, ceil_mode)(-x).   x: (..., L), typically (N, C, L)."""
    if stride is None:
        stride = kernel_size
    # TODO(synk): ceil_mode=True and MaxPool1d's return_indices not implemented.
    assert not ceil_mode, "ceil_mode=True is not supported"
    assert kernel_size >= 1 and stride >= 1 and dilation >= 1 and padding >= 0

    *lead, l_in = x.shape
    r = int(math.prod(lead)) if lead else 1
    l_padded = l_in + 2 * padding
    l_out = (l_padded - dilation * (kernel_size - 1) - 1) // stride + 1
    assert l_out >= 1, "invalid pooling configuration"

    dtype = x.dtype
    isz = jnp.dtype(dtype).itemsize
    pad_val = _pad_value(dtype)
    vmem_limit = _vmem_limit_bytes()
    budget = vmem_limit // 2        # tiles (incl. double buffering) + headroom

    x2 = x.reshape(r, l_in)
    cost = pl.CostEstimate(
        flops=(kernel_size - 1) * l_out * r,
        transcendentals=0,
        bytes_accessed=(r * l_in + r * l_out) * isz)

    if stride == 1:
        # ---- fused, transpose-free path: natural (R, L) layout -------------
        bpr = (_round_up(l_in, 128) + _round_up(l_out, 128)) * 2 * isz
        if padding > 0:
            bpr += _round_up(l_padded, 128) * isz
        rb = _pick_batch_block(r, 8, bpr, budget)
        grid = (pl.cdiv(r, rb),)
        kernel = functools.partial(
            _minpool_rows_kernel, kernel_size=kernel_size, dilation=dilation,
            l_out=l_out, padding=padding, l_in=l_in, pad_val=pad_val)
        scratch = [pltpu.VMEM((rb, l_padded), dtype)] if padding > 0 else []
        out2 = pl.pallas_call(
            kernel,
            out_shape=jax.ShapeDtypeStruct((r, l_out), dtype),
            grid_spec=pltpu.PrefetchScalarGridSpec(
                num_scalar_prefetch=0,
                grid=grid,
                in_specs=[pl.BlockSpec((rb, l_in), lambda i: (i, 0))],
                out_specs=pl.BlockSpec((rb, l_out), lambda i: (i, 0)),
                scratch_shapes=scratch),
            compiler_params=pltpu.CompilerParams(
                dimension_semantics=("parallel",),
                vmem_limit_bytes=vmem_limit),
            cost_estimate=cost,
        )(x2)
        return out2.reshape(*lead, l_out)

    # ---- stride > 1: pooled axis on sublanes (native strided tap reads) ----
    # A strided subsample along lanes needs cross-lane data movement, so this
    # path keeps the (L, R) orientation via a wrapper transpose; padding is
    # still folded into the kernel (no jnp.pad HBM pass).
    # TODO(synk): move the transpose into the kernel (XLU tile transpose) to
    # drop the extra HBM passes, mirroring the stride==1 path.
    xt = x2.T                                            # (l_in, r)
    bpl = (_round_up(l_in, 8) + _round_up(l_out, 8)) * 2 * isz
    if padding > 0:
        bpl += _round_up(l_padded, 8) * isz
    cb = _pick_batch_block(r, 128, bpl, budget)
    grid = (pl.cdiv(r, cb),)
    kernel = functools.partial(
        _minpool_cols_kernel, kernel_size=kernel_size, stride=stride,
        dilation=dilation, l_out=l_out, padding=padding, l_in=l_in,
        pad_val=pad_val)
    scratch = [pltpu.VMEM((l_padded, cb), dtype)] if padding > 0 else []
    out_t = pl.pallas_call(
        kernel,
        out_shape=jax.ShapeDtypeStruct((l_out, r), dtype),
        grid_spec=pltpu.PrefetchScalarGridSpec(
            num_scalar_prefetch=0,
            grid=grid,
            in_specs=[pl.BlockSpec((l_in, cb), lambda i: (0, i))],
            out_specs=pl.BlockSpec((l_out, cb), lambda i: (0, i)),
            scratch_shapes=scratch),
        compiler_params=pltpu.CompilerParams(
            dimension_semantics=("parallel",),
            vmem_limit_bytes=vmem_limit),
        cost_estimate=cost,
    )(xt)
    return out_t.T.reshape(*lead, l_out)


def min_pool1d_ref(x, kernel_size, stride=None, padding=0, dilation=1):
    """Pure-JAX reference mirroring the PyTorch module: -MaxPool1d(...)(-x)."""
    if stride is None:
        stride = kernel_size
    pooled = jax.lax.reduce_window(
        -x, -jnp.inf, jax.lax.max,
        window_dimensions=(1, 1, kernel_size),
        window_strides=(1, 1, stride),
        padding=((0, 0), (0, 0), (padding, padding)),
        window_dilation=(1, 1, dilation))
    return -pooled


if __name__ == "__main__":
    batch, channels, length = 2, 4, 16
    key = jax.random.PRNGKey(0)
    x = jax.random.normal(key, (batch, channels, length), dtype=jnp.float32)

    # Config 1: MinPool1d(kernel_size=2) -> stride defaults to kernel_size
    # (classic downsample-by-2; exercises the strided-tap path).
    out1 = jax.block_until_ready(min_pool1d_pallas(x, kernel_size=2))
    ref1 = min_pool1d_ref(x, kernel_size=2)
    assert out1.shape == ref1.shape, (out1.shape, ref1.shape)
    assert jnp.allclose(out1, ref1), "mismatch vs reference (config 1)"

    # Config 2: MinPool1d(kernel_size=3, stride=1, padding=1) -> same-length
    # min pooling (exercises the fused transpose-free path with in-kernel pad).
    out2 = jax.block_until_ready(
        min_pool1d_pallas(x, kernel_size=3, stride=1, padding=1))
    ref2 = min_pool1d_ref(x, kernel_size=3, stride=1, padding=1)
    assert out2.shape == ref2.shape, (out2.shape, ref2.shape)
    assert jnp.allclose(out2, ref2), "mismatch vs reference (config 2)"

    print("KERNEL_OK")
</pallas_src>

<mosaic_0001>
module attributes {stable_mosaic.version = 11 : i64} {
  func.func @_minpool_cols_kernel(%arg0: i32, %arg1: memref<16x8xf32, #tpu.memory_space<vmem>>, %arg2: memref<8x8xf32, #tpu.memory_space<vmem>>) attributes {dimension_semantics = [#tpu.dimension_semantics<parallel>], iteration_bounds = array<i64: 1>, scalar_prefetch = 0 : i64, scratch_operands = 0 : i64, tpu.core_type = #tpu.core_type<tc>, window_params = [{transform_indices = @transform_0, window_bounds = array<i64: 16, 8>}, {transform_indices = @transform_1, window_bounds = array<i64: 8, 8>}]} {
    %c0 = arith.constant 0 : index
    %c0_0 = arith.constant 0 : index
    %0 = tpu.strided_load %arg1[%c0, %c0_0] {strides = array<i32: 2, 1>} : memref<16x8xf32, #tpu.memory_space<vmem>>, vector<8x8xf32>
    %c1 = arith.constant 1 : index
    %c0_1 = arith.constant 0 : index
    %1 = tpu.strided_load %arg1[%c1, %c0_1] {strides = array<i32: 2, 1>} : memref<16x8xf32, #tpu.memory_space<vmem>>, vector<8x8xf32>
    %2 = arith.minimumf %0, %1 : vector<8x8xf32>
    %c0_2 = arith.constant 0 : index
    %c0_3 = arith.constant 0 : index
    %3 = vector.load %arg2[%c0_2, %c0_3] : memref<8x8xf32, #tpu.memory_space<vmem>>, vector<8x8xf32>
    tpu.vector_store %arg2[%c0_2, %c0_3], %2 {strides = array<i32>} : memref<8x8xf32, #tpu.memory_space<vmem>>, vector<8x8xf32>,
    return
  }
  func.func @transform_0(%arg0: i32) -> (i32, i32) {
    %c0_i32 = arith.constant 0 : i32
    %c0_i32_0 = arith.constant 0 : i32
    return %c0_i32, %arg0 : i32, i32
  }
  func.func @transform_1(%arg0: i32) -> (i32, i32) {
    %c0_i32 = arith.constant 0 : i32
    %c0_i32_0 = arith.constant 0 : i32
    return %c0_i32, %arg0 : i32, i32
  }
}

</mosaic_0001>

<llo_original>
// kernel: tpu_custom_call.1
$region0: #{tpu_custom_call.1}
  #allocation0 [shape = 'u32[]', space=smem, size = 0x4, offset = 0x4, fixed_abs, tag = 'smem constant byte address 0x4 - core index']
  #allocation1 [shape = 'u32[72,128]{1,0:T(1,128)}', space=vmem, size = 0x9000, scoped, tag = 'internal scratch']
  %s0 = inlined_call_operand.vmem [shape: f32[16,8], index: 0, kind: input, shape index: {}]
  %s1 = inlined_call_operand.hbm [shape: f32[8,8], index: 1, kind: output, shape index: {}]
  %s2 = sld [smem:[#allocation0]]
  $region14: #{tpu_custom_call.1} parent=0
    _
  %s4 = ssub.s32 1, %s2
  %s5 = scalar_select 0, %s4, %s2
  $region1: #{tpu_custom_call.1} parent=0
    #allocation2 [shape = 'u8[4096]{0}', space=vmem, size = 0x1000, scoped, tag = 'output window, operand 0, single buffered']
    #allocation3 [shape = 's32[1]{0}', space=sflag, size = 0x4, scoped, tag = 'scoped memory for tpu_custom_call.1']
    %6 = vsyncpa [#allocation3], 0
    // Predicated region
    $region2: #{tpu_custom_call.1} parent=1 // pred_check
      _
    $region3: #{tpu_custom_call.1} parent=1 // pred_check_branch
      %8 = sbr.rel (0) target = $region5
    $region4: #{tpu_custom_call.1} parent=1 // pred_region
      _
    $region5: #{tpu_custom_call.1} parent=1 // pred_fallthru
      _
    %v9 = vld [vmem:[%s0] ss:$2 sm:$0xff]
    %s10 = scalar_lea.vmem %s0, 1
    %v11 = vld [vmem:[%s10] ss:$2 sm:$0xff]
    %v12 = vmin.f32 %v9, %v11
    %vm13 = vcmask 64512
    %14 = vst.msk [vmem:[#allocation2] sm:$0xff] %vm13, %v12
    // Predicated region
    $region6: #{tpu_custom_call.1} parent=1 // pred_check
      _
    $region7: #{tpu_custom_call.1} parent=1 // pred_check_branch
      %16 = sbr.rel (0) target = $region9
    $region8: #{tpu_custom_call.1} parent=1 // pred_region
      %18 = vsyncadd [#allocation3], 0
      %s20 = sshll.u32 [#allocation2], 4
      %s21 = int_to_ptr.vmem [resolvable:$true] %s20
      %s22 = sshll.u32 %s1, 4
      %s23 = int_to_ptr.hbm [resolvable:$true] %s22
      %25 = dma.vmem_to_hbm [thread:$0]  %s21, 128, %s23, [#allocation3]
    $region9: #{tpu_custom_call.1} parent=1 // pred_fallthru
      _
    // Predicated region
    $region10: #{tpu_custom_call.1} parent=1 // pred_check
      _
    $region11: #{tpu_custom_call.1} parent=1 // pred_check_branch
      %27 = sbr.rel (0) target = $region13
    $region12: #{tpu_custom_call.1} parent=1 // pred_region
      %29 = dma.done [#allocation3], 128
    $region13: #{tpu_custom_call.1} parent=1 // pred_fallthru
      _
    %30 = vsyncpa [#allocation3], 1

</llo_original>
